<compile_context>
chip_gen: v5e
topology: v5e:2x2
jax: 0.10.0
libtpu: 0.0.40
codegen_flags: <defaults>
</compile_context>

<pallas_src>
import jax
import jax.numpy as jnp
from jax.experimental import pallas as pl
from jax.experimental.pallas import tpu as pltpu

_LANE = 128
_MIN_GRID_STEPS = 4  # >= 2 steps per TensorCore on v7x megacore + pipeline overlap


# --------------------------------------------------------------------------- #
# Kernel body (shape-generic over the per-channel pixel plane)
# --------------------------------------------------------------------------- #
def _se_body(load, store, w1_ref, b1_ref, w2_ref, b2_ref, out_dtype):
    C = w1_ref.shape[0]
    Cr = w1_ref.shape[1]

    # ---- fc1 (1x1 conv, C -> Cr) + ReLU ------------------------------------
    # Bias folded into the first FMA.  x channels are read inline (short-lived
    # one-plane temporaries); only the Cr accumulator planes stay live.
    x0 = load(0).astype(jnp.float32)
    acc = [x0 * w1_ref[0, r] + b1_ref[r] for r in range(Cr)]
    for c in range(1, C):
        xc = load(c).astype(jnp.float32)
        for r in range(Cr):
            acc[r] = acc[r] + xc * w1_ref[c, r]
    hs = [jnp.maximum(a, 0.0) for a in acc]

    # ---- fc2 (1x1 conv, Cr -> C) + sigmoid + gate --------------------------
    # sigmoid(z) == 0.5 * (tanh(0.5*z) + 1): one EUP push, no true divide.
    for c in range(C):
        z = hs[0] * w2_ref[0, c] + b2_ref[c]
        for r in range(1, Cr):
            z = z + hs[r] * w2_ref[r, c]
        gate = 0.5 * (jnp.tanh(0.5 * z) + 1.0)
        store(c, (load(c).astype(jnp.float32) * gate).astype(out_dtype))


def _se_kernel_lanes(x_ref, w1_ref, b1_ref, w2_ref, b2_ref, o_ref):
    # x_ref / o_ref: (1, C, rt, 128) — lane-dense, fully packed channel planes.
    def load(c):
        return x_ref[0, c, :, :]

    def store(c, v):
        o_ref[0, c, :, :] = v

    _se_body(load, store, w1_ref, b1_ref, w2_ref, b2_ref, o_ref.dtype)


def _se_kernel_ragged(x_ref, w1_ref, b1_ref, w2_ref, b2_ref, o_ref):
    # x_ref / o_ref: (1, C, pt) — used only when H*W % 128 != 0 so the wrapper
    # needs no pad/slice HBM round-trip.  Pallas masks the partial edge block.
    def load(c):
        return x_ref[0:1, c:c + 1, :]

    def store(c, v):
        o_ref[0:1, c:c + 1, :] = v

    _se_body(load, store, w1_ref, b1_ref, w2_ref, b2_ref, o_ref.dtype)


# --------------------------------------------------------------------------- #
# Generation-aware sizing
# --------------------------------------------------------------------------- #
def _vmem_capacity_bytes():
    try:
        return int(pltpu.get_tpu_info().vmem_capacity_bytes)
    except Exception:
        return 64 * 1024 * 1024  # conservative (v7x per-core VMEM)


def _budgets():
    cap = _vmem_capacity_bytes()
    # v5e/v6e (128 MiB) -> limit 64 MiB, 8 MiB blocks; v7x (64 MiB) -> 32 / 4 MiB.
    vmem_limit = max(min(64 * 1024 * 1024, cap // 2), 8 * 1024 * 1024)
    max_block = max(min(8 * 1024 * 1024, vmem_limit // 8), 256 * 1024)
    return max_block, vmem_limit


def _pick_row_tile(rows, n_batch, c, itemsize, max_block_bytes):
    # Budget in f32-equivalents: in-kernel math is f32, so sub-f32 inputs still
    # produce f32-sized temporaries (bf16 VMEM budgeting from the review).
    eff = max(itemsize, 4)
    max_rows = max(max_block_bytes // (c * _LANE * eff), 8)
    min_tiles = -(-_MIN_GRID_STEPS // n_batch)                 # ceil
    target = min(max_rows, -(-rows // min_tiles))              # ceil
    rt = max((target // 8) * 8, 8)
    return rows if rt >= rows else rt


def _pick_pixel_tile(pixels, n_batch, itemsize, max_block_bytes):
    eff = max(itemsize, 4)
    # (8,128) VMEM tiling pads the C (sublane) axis up to 8 rows.
    max_pix = max((max_block_bytes // (8 * eff * _LANE)) * _LANE, _LANE)
    min_tiles = -(-_MIN_GRID_STEPS // n_batch)
    target = min(max_pix, -(-pixels // min_tiles))
    pt = max((target // _LANE) * _LANE, _LANE)
    return pixels if pt >= pixels else pt


# --------------------------------------------------------------------------- #
# Wrapper
# --------------------------------------------------------------------------- #
@jax.jit
def se_module_forward(x_nchw, w1, b1, w2, b2):
    """SEModule forward.

    x: (N, C, H, W); w1: (C, Cr) (= fc1.weight[:, :, 0, 0].T); b1: (Cr,);
    w2: (Cr, C) (= fc2.weight[:, :, 0, 0].T); b2: (C,).
    """
    N, C, H, W = x_nchw.shape
    Cr = w1.shape[1]
    P = H * W
    itemsize = jnp.dtype(x_nchw.dtype).itemsize
    max_block, vmem_limit = _budgets()

    cost = pl.CostEstimate(
        flops=int(N * P * (4 * C * Cr + C)),
        transcendentals=int(N * P * C),
        bytes_accessed=int(2 * N * C * P * itemsize),
    )
    params = pltpu.CompilerParams(
        dimension_semantics=("parallel", "parallel"),
        vmem_limit_bytes=vmem_limit,
    )
    smem = pl.BlockSpec(memory_space=pltpu.MemorySpace.SMEM)

    if P % _LANE == 0:
        # Fast path: free metadata reshape; lane-dense (rt, 128) channel planes.
        R = P // _LANE
        x4 = x_nchw.reshape(N, C, R, _LANE)
        rt = _pick_row_tile(R, N, C, itemsize, max_block)
        grid = (N, pl.cdiv(R, rt))
        blk = (1, C, rt, _LANE)
        idx = lambda n, i: (n, 0, i, 0)
        # NOTE: pipeline_mode=pl.Buffered(3) on the input is a possible further
        # tweak if profiling shows exposed DMA with small tiles; default 2-deep
        # buffering is kept to stay VMEM-safe.
        out = pl.pallas_call(
            _se_kernel_lanes,
            out_shape=jax.ShapeDtypeStruct((N, C, R, _LANE), x_nchw.dtype),
            grid_spec=pltpu.PrefetchScalarGridSpec(
                num_scalar_prefetch=0,
                grid=grid,
                in_specs=[pl.BlockSpec(blk, idx), smem, smem, smem, smem],
                out_specs=pl.BlockSpec(blk, idx),
            ),
            compiler_params=params,
            cost_estimate=cost,
        )(x4, w1, b1, w2, b2)
        return out.reshape(N, C, H, W)

    # Ragged pixel count: keep the native (N, C, P) layout and let Pallas mask
    # the partial trailing pixel block — no jnp.pad / output slice, so no extra
    # HBM round-trip.  Slightly lower vreg utilization (C rows on the sublane
    # axis), which is fine for this HBM-bound kernel.
    x3 = x_nchw.reshape(N, C, P)
    pt = _pick_pixel_tile(P, N, itemsize, max_block)
    grid = (N, pl.cdiv(P, pt))
    blk = (1, C, pt)
    idx = lambda n, i: (n, 0, i)
    out = pl.pallas_call(
        _se_kernel_ragged,
        out_shape=jax.ShapeDtypeStruct((N, C, P), x_nchw.dtype),
        grid_spec=pltpu.PrefetchScalarGridSpec(
            num_scalar_prefetch=0,
            grid=grid,
            in_specs=[pl.BlockSpec(blk, idx), smem, smem, smem, smem],
            out_specs=pl.BlockSpec(blk, idx),
        ),
        compiler_params=params,
        cost_estimate=cost,
    )(x3, w1, b1, w2, b2)
    return out.reshape(N, C, H, W)


# --------------------------------------------------------------------------- #
# Pure-JAX reference of the PyTorch forward (AvgPool2d(1) == identity)
# --------------------------------------------------------------------------- #
def _reference(x_nchw, w1, b1, w2, b2):
    xf = x_nchw.astype(jnp.float32)
    h = jnp.maximum(jnp.einsum("nchw,cr->nrhw", xf, w1) + b1[None, :, None, None], 0.0)
    s = jax.nn.sigmoid(jnp.einsum("nrhw,rc->nchw", h, w2) + b2[None, :, None, None])
    return (xf * s).astype(x_nchw.dtype)


if __name__ == "__main__":
    # Module config: channels=4, reduction=2 -> fc1: 4->2, fc2: 2->4
    N, C, H, W = 2, 4, 16, 16
    reduction = 2
    Cr = C // reduction

    key = jax.random.PRNGKey(0)
    kx, kw1, kb1, kw2, kb2, kx2 = jax.random.split(key, 6)

    x = jax.random.normal(kx, (N, C, H, W), dtype=jnp.float32)

    # PyTorch fc1.weight is (Cr, C, 1, 1); stored here as (C, Cr) so the kernel
    # computes sum_c w1[c,r]*x[c] == conv1x1(x).  Likewise w2 is (Cr, C).
    w1 = jax.random.normal(kw1, (C, Cr), dtype=jnp.float32) * (1.0 / jnp.sqrt(C))
    b1 = jax.random.normal(kb1, (Cr,), dtype=jnp.float32) * 0.1
    w2 = jax.random.normal(kw2, (Cr, C), dtype=jnp.float32) * (1.0 / jnp.sqrt(Cr))
    b2 = jax.random.normal(kb2, (C,), dtype=jnp.float32) * 0.1

    # Main (lane-dense) path: H*W divisible by 128.
    out = jax.block_until_ready(se_module_forward(x, w1, b1, w2, b2))
    ref = _reference(x, w1, b1, w2, b2)
    assert out.shape == x.shape, (out.shape, x.shape)
    assert jnp.allclose(out, ref, atol=2e-5, rtol=2e-5), "mismatch vs reference (dense path)"

    # Ragged path: H*W = 225 not divisible by 128 — handled in-kernel, no pad/slice.
    x_r = jax.random.normal(kx2, (N, C, 15, 15), dtype=jnp.float32)
    out_r = jax.block_until_ready(se_module_forward(x_r, w1, b1, w2, b2))
    ref_r = _reference(x_r, w1, b1, w2, b2)
    assert out_r.shape == x_r.shape, (out_r.shape, x_r.shape)
    assert jnp.allclose(out_r, ref_r, atol=2e-5, rtol=2e-5), "mismatch vs reference (ragged path)"

    print("KERNEL_OK")
</pallas_src>

<mosaic_0001>
module attributes {stable_mosaic.version = 11 : i64} {
  func.func @_se_kernel_lanes(%arg0: i32, %arg1: i32, %arg2: memref<1x4x2x128xf32, #tpu.memory_space<vmem>>, %arg3: memref<4x2xf32, #tpu.memory_space<smem>>, %arg4: memref<2xf32, #tpu.memory_space<smem>>, %arg5: memref<2x4xf32, #tpu.memory_space<smem>>, %arg6: memref<4xf32, #tpu.memory_space<smem>>, %arg7: memref<1x4x2x128xf32, #tpu.memory_space<vmem>>) attributes {dimension_semantics = [#tpu.dimension_semantics<parallel>, #tpu.dimension_semantics<parallel>], iteration_bounds = array<i64: 2, 1>, scalar_prefetch = 0 : i64, scratch_operands = 0 : i64, tpu.core_type = #tpu.core_type<tc>, window_params = [{transform_indices = @transform_0, window_bounds = array<i64: 1, 4, 2, 128>}, {transform_indices = @transform_1, window_bounds = array<i64: 4, 2>}, {transform_indices = @transform_2, window_bounds = array<i64: 2>}, {transform_indices = @transform_3, window_bounds = array<i64: 2, 4>}, {transform_indices = @transform_4, window_bounds = array<i64: 4>}, {transform_indices = @transform_5, window_bounds = array<i64: 1, 4, 2, 128>}]} {
    %c0 = arith.constant 0 : index
    %c0_0 = arith.constant 0 : index
    %c0_1 = arith.constant 0 : index
    %c0_2 = arith.constant 0 : index
    %0 = vector.load %arg2[%c0, %c0_0, %c0_1, %c0_2] : memref<1x4x2x128xf32, #tpu.memory_space<vmem>>, vector<1x1x2x128xf32>
    %1 = vector.shape_cast %0 : vector<1x1x2x128xf32> to vector<2x128xf32>
    %c0_3 = arith.constant 0 : index
    %c0_4 = arith.constant 0 : index
    %2 = memref.load %arg3[%c0_3, %c0_4] : memref<4x2xf32, #tpu.memory_space<smem>>
    %3 = vector.broadcast %2 : f32 to vector<2x128xf32>
    %4 = arith.mulf %1, %3 : vector<2x128xf32>
    %c0_5 = arith.constant 0 : index
    %5 = memref.load %arg4[%c0_5] : memref<2xf32, #tpu.memory_space<smem>>
    %6 = vector.broadcast %5 : f32 to vector<2x128xf32>
    %7 = arith.addf %4, %6 : vector<2x128xf32>
    %c0_6 = arith.constant 0 : index
    %c1 = arith.constant 1 : index
    %8 = memref.load %arg3[%c0_6, %c1] : memref<4x2xf32, #tpu.memory_space<smem>>
    %9 = vector.broadcast %8 : f32 to vector<2x128xf32>
    %10 = arith.mulf %1, %9 : vector<2x128xf32>
    %c1_7 = arith.constant 1 : index
    %11 = memref.load %arg4[%c1_7] : memref<2xf32, #tpu.memory_space<smem>>
    %12 = vector.broadcast %11 : f32 to vector<2x128xf32>
    %13 = arith.addf %10, %12 : vector<2x128xf32>
    %c0_8 = arith.constant 0 : index
    %c1_9 = arith.constant 1 : index
    %c0_10 = arith.constant 0 : index
    %c0_11 = arith.constant 0 : index
    %14 = vector.load %arg2[%c0_8, %c1_9, %c0_10, %c0_11] : memref<1x4x2x128xf32, #tpu.memory_space<vmem>>, vector<1x1x2x128xf32>
    %15 = vector.shape_cast %14 : vector<1x1x2x128xf32> to vector<2x128xf32>
    %c1_12 = arith.constant 1 : index
    %c0_13 = arith.constant 0 : index
    %16 = memref.load %arg3[%c1_12, %c0_13] : memref<4x2xf32, #tpu.memory_space<smem>>
    %17 = vector.broadcast %16 : f32 to vector<2x128xf32>
    %18 = arith.mulf %15, %17 : vector<2x128xf32>
    %19 = arith.addf %7, %18 : vector<2x128xf32>
    %c1_14 = arith.constant 1 : index
    %c1_15 = arith.constant 1 : index
    %20 = memref.load %arg3[%c1_14, %c1_15] : memref<4x2xf32, #tpu.memory_space<smem>>
    %21 = vector.broadcast %20 : f32 to vector<2x128xf32>
    %22 = arith.mulf %15, %21 : vector<2x128xf32>
    %23 = arith.addf %13, %22 : vector<2x128xf32>
    %c0_16 = arith.constant 0 : index
    %c2 = arith.constant 2 : index
    %c0_17 = arith.constant 0 : index
    %c0_18 = arith.constant 0 : index
    %24 = vector.load %arg2[%c0_16, %c2, %c0_17, %c0_18] : memref<1x4x2x128xf32, #tpu.memory_space<vmem>>, vector<1x1x2x128xf32>
    %25 = vector.shape_cast %24 : vector<1x1x2x128xf32> to vector<2x128xf32>
    %c2_19 = arith.constant 2 : index
    %c0_20 = arith.constant 0 : index
    %26 = memref.load %arg3[%c2_19, %c0_20] : memref<4x2xf32, #tpu.memory_space<smem>>
    %27 = vector.broadcast %26 : f32 to vector<2x128xf32>
    %28 = arith.mulf %25, %27 : vector<2x128xf32>
    %29 = arith.addf %19, %28 : vector<2x128xf32>
    %c2_21 = arith.constant 2 : index
    %c1_22 = arith.constant 1 : index
    %30 = memref.load %arg3[%c2_21, %c1_22] : memref<4x2xf32, #tpu.memory_space<smem>>
    %31 = vector.broadcast %30 : f32 to vector<2x128xf32>
    %32 = arith.mulf %25, %31 : vector<2x128xf32>
    %33 = arith.addf %23, %32 : vector<2x128xf32>
    %c0_23 = arith.constant 0 : index
    %c3 = arith.constant 3 : index
    %c0_24 = arith.constant 0 : index
    %c0_25 = arith.constant 0 : index
    %34 = vector.load %arg2[%c0_23, %c3, %c0_24, %c0_25] : memref<1x4x2x128xf32, #tpu.memory_space<vmem>>, vector<1x1x2x128xf32>
    %35 = vector.shape_cast %34 : vector<1x1x2x128xf32> to vector<2x128xf32>
    %c3_26 = arith.constant 3 : index
    %c0_27 = arith.constant 0 : index
    %36 = memref.load %arg3[%c3_26, %c0_27] : memref<4x2xf32, #tpu.memory_space<smem>>
    %37 = vector.broadcast %36 : f32 to vector<2x128xf32>
    %38 = arith.mulf %35, %37 : vector<2x128xf32>
    %39 = arith.addf %29, %38 : vector<2x128xf32>
    %c3_28 = arith.constant 3 : index
    %c1_29 = arith.constant 1 : index
    %40 = memref.load %arg3[%c3_28, %c1_29] : memref<4x2xf32, #tpu.memory_space<smem>>
    %41 = vector.broadcast %40 : f32 to vector<2x128xf32>
    %42 = arith.mulf %35, %41 : vector<2x128xf32>
    %43 = arith.addf %33, %42 : vector<2x128xf32>
    %cst = arith.constant 0.000000e+00 : f32
    %44 = vector.broadcast %cst : f32 to vector<2x128xf32>
    %45 = arith.maximumf %39, %44 : vector<2x128xf32>
    %cst_30 = arith.constant 0.000000e+00 : f32
    %46 = vector.broadcast %cst_30 : f32 to vector<2x128xf32>
    %47 = arith.maximumf %43, %46 : vector<2x128xf32>
    %c0_31 = arith.constant 0 : index
    %c0_32 = arith.constant 0 : index
    %48 = memref.load %arg5[%c0_31, %c0_32] : memref<2x4xf32, #tpu.memory_space<smem>>
    %49 = vector.broadcast %48 : f32 to vector<2x128xf32>
    %50 = arith.mulf %45, %49 : vector<2x128xf32>
    %c0_33 = arith.constant 0 : index
    %51 = memref.load %arg6[%c0_33] : memref<4xf32, #tpu.memory_space<smem>>
    %52 = vector.broadcast %51 : f32 to vector<2x128xf32>
    %53 = arith.addf %50, %52 : vector<2x128xf32>
    %c1_34 = arith.constant 1 : index
    %c0_35 = arith.constant 0 : index
    %54 = memref.load %arg5[%c1_34, %c0_35] : memref<2x4xf32, #tpu.memory_space<smem>>
    %55 = vector.broadcast %54 : f32 to vector<2x128xf32>
    %56 = arith.mulf %47, %55 : vector<2x128xf32>
    %57 = arith.addf %53, %56 : vector<2x128xf32>
    %cst_36 = arith.constant 5.000000e-01 : f32
    %58 = vector.broadcast %cst_36 : f32 to vector<2x128xf32>
    %59 = arith.mulf %58, %57 : vector<2x128xf32>
    %60 = math.tanh %59 : vector<2x128xf32>
    %cst_37 = arith.constant 1.000000e+00 : f32
    %61 = vector.broadcast %cst_37 : f32 to vector<2x128xf32>
    %62 = arith.addf %60, %61 : vector<2x128xf32>
    %cst_38 = arith.constant 5.000000e-01 : f32
    %63 = vector.broadcast %cst_38 : f32 to vector<2x128xf32>
    %64 = arith.mulf %63, %62 : vector<2x128xf32>
    %c0_39 = arith.constant 0 : index
    %c0_40 = arith.constant 0 : index
    %c0_41 = arith.constant 0 : index
    %c0_42 = arith.constant 0 : index
    %65 = vector.load %arg2[%c0_39, %c0_40, %c0_41, %c0_42] : memref<1x4x2x128xf32, #tpu.memory_space<vmem>>, vector<1x1x2x128xf32>
    %66 = vector.shape_cast %65 : vector<1x1x2x128xf32> to vector<2x128xf32>
    %67 = arith.mulf %66, %64 : vector<2x128xf32>
    %c0_43 = arith.constant 0 : index
    %c0_44 = arith.constant 0 : index
    %c0_45 = arith.constant 0 : index
    %c0_46 = arith.constant 0 : index
    %68 = vector.load %arg7[%c0_43, %c0_44, %c0_45, %c0_46] : memref<1x4x2x128xf32, #tpu.memory_space<vmem>>, vector<1x1x2x128xf32>
    %69 = vector.shape_cast %68 : vector<1x1x2x128xf32> to vector<2x128xf32>
    %70 = vector.shape_cast %67 : vector<2x128xf32> to vector<1x1x2x128xf32>
    tpu.vector_store %arg7[%c0_43, %c0_44, %c0_45, %c0_46], %70 {strides = array<i32>} : memref<1x4x2x128xf32, #tpu.memory_space<vmem>>, vector<1x1x2x128xf32>,
    %c0_47 = arith.constant 0 : index
    %c1_48 = arith.constant 1 : index
    %71 = memref.load %arg5[%c0_47, %c1_48] : memref<2x4xf32, #tpu.memory_space<smem>>
    %72 = vector.broadcast %71 : f32 to vector<2x128xf32>
    %73 = arith.mulf %45, %72 : vector<2x128xf32>
    %c1_49 = arith.constant 1 : index
    %74 = memref.load %arg6[%c1_49] : memref<4xf32, #tpu.memory_space<smem>>
    %75 = vector.broadcast %74 : f32 to vector<2x128xf32>
    %76 = arith.addf %73, %75 : vector<2x128xf32>
    %c1_50 = arith.constant 1 : index
    %c1_51 = arith.constant 1 : index
    %77 = memref.load %arg5[%c1_50, %c1_51] : memref<2x4xf32, #tpu.memory_space<smem>>
    %78 = vector.broadcast %77 : f32 to vector<2x128xf32>
    %79 = arith.mulf %47, %78 : vector<2x128xf32>
    %80 = arith.addf %76, %79 : vector<2x128xf32>
    %cst_52 = arith.constant 5.000000e-01 : f32
    %81 = vector.broadcast %cst_52 : f32 to vector<2x128xf32>
    %82 = arith.mulf %81, %80 : vector<2x128xf32>
    %83 = math.tanh %82 : vector<2x128xf32>
    %cst_53 = arith.constant 1.000000e+00 : f32
    %84 = vector.broadcast %cst_53 : f32 to vector<2x128xf32>
    %85 = arith.addf %83, %84 : vector<2x128xf32>
    %cst_54 = arith.constant 5.000000e-01 : f32
    %86 = vector.broadcast %cst_54 : f32 to vector<2x128xf32>
    %87 = arith.mulf %86, %85 : vector<2x128xf32>
    %c0_55 = arith.constant 0 : index
    %c1_56 = arith.constant 1 : index
    %c0_57 = arith.constant 0 : index
    %c0_58 = arith.constant 0 : index
    %88 = vector.load %arg2[%c0_55, %c1_56, %c0_57, %c0_58] : memref<1x4x2x128xf32, #tpu.memory_space<vmem>>, vector<1x1x2x128xf32>
    %89 = vector.shape_cast %88 : vector<1x1x2x128xf32> to vector<2x128xf32>
    %90 = arith.mulf %89, %87 : vector<2x128xf32>
    %c0_59 = arith.constant 0 : index
    %c1_60 = arith.constant 1 : index
    %c0_61 = arith.constant 0 : index
    %c0_62 = arith.constant 0 : index
    %91 = vector.load %arg7[%c0_59, %c1_60, %c0_61, %c0_62] : memref<1x4x2x128xf32, #tpu.memory_space<vmem>>, vector<1x1x2x128xf32>
    %92 = vector.shape_cast %91 : vector<1x1x2x128xf32> to vector<2x128xf32>
    %93 = vector.shape_cast %90 : vector<2x128xf32> to vector<1x1x2x128xf32>
    tpu.vector_store %arg7[%c0_59, %c1_60, %c0_61, %c0_62], %93 {strides = array<i32>} : memref<1x4x2x128xf32, #tpu.memory_space<vmem>>, vector<1x1x2x128xf32>,
    %c0_63 = arith.constant 0 : index
    %c2_64 = arith.constant 2 : index
    %94 = memref.load %arg5[%c0_63, %c2_64] : memref<2x4xf32, #tpu.memory_space<smem>>
    %95 = vector.broadcast %94 : f32 to vector<2x128xf32>
    %96 = arith.mulf %45, %95 : vector<2x128xf32>
    %c2_65 = arith.constant 2 : index
    %97 = memref.load %arg6[%c2_65] : memref<4xf32, #tpu.memory_space<smem>>
    %98 = vector.broadcast %97 : f32 to vector<2x128xf32>
    %99 = arith.addf %96, %98 : vector<2x128xf32>
    %c1_66 = arith.constant 1 : index
    %c2_67 = arith.constant 2 : index
    %100 = memref.load %arg5[%c1_66, %c2_67] : memref<2x4xf32, #tpu.memory_space<smem>>
    %101 = vector.broadcast %100 : f32 to vector<2x128xf32>
    %102 = arith.mulf %47, %101 : vector<2x128xf32>
    %103 = arith.addf %99, %102 : vector<2x128xf32>
    %cst_68 = arith.constant 5.000000e-01 : f32
    %104 = vector.broadcast %cst_68 : f32 to vector<2x128xf32>
    %105 = arith.mulf %104, %103 : vector<2x128xf32>
    %106 = math.tanh %105 : vector<2x128xf32>
    %cst_69 = arith.constant 1.000000e+00 : f32
    %107 = vector.broadcast %cst_69 : f32 to vector<2x128xf32>
    %108 = arith.addf %106, %107 : vector<2x128xf32>
    %cst_70 = arith.constant 5.000000e-01 : f32
    %109 = vector.broadcast %cst_70 : f32 to vector<2x128xf32>
    %110 = arith.mulf %109, %108 : vector<2x128xf32>
    %c0_71 = arith.constant 0 : index
    %c2_72 = arith.constant 2 : index
    %c0_73 = arith.constant 0 : index
    %c0_74 = arith.constant 0 : index
    %111 = vector.load %arg2[%c0_71, %c2_72, %c0_73, %c0_74] : memref<1x4x2x128xf32, #tpu.memory_space<vmem>>, vector<1x1x2x128xf32>
    %112 = vector.shape_cast %111 : vector<1x1x2x128xf32> to vector<2x128xf32>
    %113 = arith.mulf %112, %110 : vector<2x128xf32>
    %c0_75 = arith.constant 0 : index
    %c2_76 = arith.constant 2 : index
    %c0_77 = arith.constant 0 : index
    %c0_78 = arith.constant 0 : index
    %114 = vector.load %arg7[%c0_75, %c2_76, %c0_77, %c0_78] : memref<1x4x2x128xf32, #tpu.memory_space<vmem>>, vector<1x1x2x128xf32>
    %115 = vector.shape_cast %114 : vector<1x1x2x128xf32> to vector<2x128xf32>
    %116 = vector.shape_cast %113 : vector<2x128xf32> to vector<1x1x2x128xf32>
    tpu.vector_store %arg7[%c0_75, %c2_76, %c0_77, %c0_78], %116 {strides = array<i32>} : memref<1x4x2x128xf32, #tpu.memory_space<vmem>>, vector<1x1x2x128xf32>,
    %c0_79 = arith.constant 0 : index
    %c3_80 = arith.constant 3 : index
    %117 = memref.load %arg5[%c0_79, %c3_80] : memref<2x4xf32, #tpu.memory_space<smem>>
    %118 = vector.broadcast %117 : f32 to vector<2x128xf32>
    %119 = arith.mulf %45, %118 : vector<2x128xf32>
    %c3_81 = arith.constant 3 : index
    %120 = memref.load %arg6[%c3_81] : memref<4xf32, #tpu.memory_space<smem>>
    %121 = vector.broadcast %120 : f32 to vector<2x128xf32>
    %122 = arith.addf %119, %121 : vector<2x128xf32>
    %c1_82 = arith.constant 1 : index
    %c3_83 = arith.constant 3 : index
    %123 = memref.load %arg5[%c1_82, %c3_83] : memref<2x4xf32, #tpu.memory_space<smem>>
    %124 = vector.broadcast %123 : f32 to vector<2x128xf32>
    %125 = arith.mulf %47, %124 : vector<2x128xf32>
    %126 = arith.addf %122, %125 : vector<2x128xf32>
    %cst_84 = arith.constant 5.000000e-01 : f32
    %127 = vector.broadcast %cst_84 : f32 to vector<2x128xf32>
    %128 = arith.mulf %127, %126 : vector<2x128xf32>
    %129 = math.tanh %128 : vector<2x128xf32>
    %cst_85 = arith.constant 1.000000e+00 : f32
    %130 = vector.broadcast %cst_85 : f32 to vector<2x128xf32>
    %131 = arith.addf %129, %130 : vector<2x128xf32>
    %cst_86 = arith.constant 5.000000e-01 : f32
    %132 = vector.broadcast %cst_86 : f32 to vector<2x128xf32>
    %133 = arith.mulf %132, %131 : vector<2x128xf32>
    %c0_87 = arith.constant 0 : index
    %c3_88 = arith.constant 3 : index
    %c0_89 = arith.constant 0 : index
    %c0_90 = arith.constant 0 : index
    %134 = vector.load %arg2[%c0_87, %c3_88, %c0_89, %c0_90] : memref<1x4x2x128xf32, #tpu.memory_space<vmem>>, vector<1x1x2x128xf32>
    %135 = vector.shape_cast %134 : vector<1x1x2x128xf32> to vector<2x128xf32>
    %136 = arith.mulf %135, %133 : vector<2x128xf32>
    %c0_91 = arith.constant 0 : index
    %c3_92 = arith.constant 3 : index
    %c0_93 = arith.constant 0 : index
    %c0_94 = arith.constant 0 : index
    %137 = vector.load %arg7[%c0_91, %c3_92, %c0_93, %c0_94] : memref<1x4x2x128xf32, #tpu.memory_space<vmem>>, vector<1x1x2x128xf32>
    %138 = vector.shape_cast %137 : vector<1x1x2x128xf32> to vector<2x128xf32>
    %139 = vector.shape_cast %136 : vector<2x128xf32> to vector<1x1x2x128xf32>
    tpu.vector_store %arg7[%c0_91, %c3_92, %c0_93, %c0_94], %139 {strides = array<i32>} : memref<1x4x2x128xf32, #tpu.memory_space<vmem>>, vector<1x1x2x128xf32>,
    return
  }
  func.func @transform_0(%arg0: i32, %arg1: i32) -> (i32, i32, i32, i32) {
    %c0_i32 = arith.constant 0 : i32
    %c0_i32_0 = arith.constant 0 : i32
    %c0_i32_1 = arith.constant 0 : i32
    return %arg0, %c0_i32, %arg1, %c0_i32_0 : i32, i32, i32, i32
  }
  func.func @transform_1(%arg0: i32, %arg1: i32) -> (i32, i32) {
    %c0_i32 = arith.constant 0 : i32
    %c0_i32_0 = arith.constant 0 : i32
    %c0_i32_1 = arith.constant 0 : i32
    return %c0_i32, %c0_i32_0 : i32, i32
  }
  func.func @transform_2(%arg0: i32, %arg1: i32) -> i32 {
    %c0_i32 = arith.constant 0 : i32
    %c0_i32_0 = arith.constant 0 : i32
    return %c0_i32 : i32
  }
  func.func @transform_3(%arg0: i32, %arg1: i32) -> (i32, i32) {
    %c0_i32 = arith.constant 0 : i32
    %c0_i32_0 = arith.constant 0 : i32
    %c0_i32_1 = arith.constant 0 : i32
    return %c0_i32, %c0_i32_0 : i32, i32
  }
  func.func @transform_4(%arg0: i32, %arg1: i32) -> i32 {
    %c0_i32 = arith.constant 0 : i32
    %c0_i32_0 = arith.constant 0 : i32
    return %c0_i32 : i32
  }
  func.func @transform_5(%arg0: i32, %arg1: i32) -> (i32, i32, i32, i32) {
    %c0_i32 = arith.constant 0 : i32
    %c0_i32_0 = arith.constant 0 : i32
    %c0_i32_1 = arith.constant 0 : i32
    return %arg0, %c0_i32, %arg1, %c0_i32_0 : i32, i32, i32, i32
  }
}

</mosaic_0001>

<llo_original>
// kernel: se_module_forward.1
$region0: #{se_module_forward.1}
  #allocation0 [shape = 'u32[]', space=smem, size = 0x4, offset = 0x4, fixed_abs, tag = 'smem constant byte address 0x4 - core index']
  #allocation1 [shape = 'u32[72,128]{1,0:T(1,128)}', space=vmem, size = 0x9000, scoped, tag = 'internal scratch']
  %s0 = inlined_call_operand.vmem [shape: f32[2,4,2,128], index: 0, kind: input, shape index: {}]
  %s1 = inlined_call_operand.vmem [shape: f32[4,2], index: 1, kind: input, shape index: {}]
  %s2 = inlined_call_operand.vmem [shape: f32[2], index: 2, kind: input, shape index: {}]
  %s3 = inlined_call_operand.vmem [shape: f32[2,4], index: 3, kind: input, shape index: {}]
  %s4 = inlined_call_operand.vmem [shape: f32[4], index: 4, kind: input, shape index: {}]
  %s5 = inlined_call_operand.vmem [shape: f32[2,4,2,128], index: 5, kind: output, shape index: {}]
  %s6 = sld [smem:[#allocation0]]
  $region69: #{se_module_forward.1} parent=0
    _
  %s8 = ssub.s32 1, %s6
  %s9 = scalar_select 0, %s8, %s6
  $region1: #{se_module_forward.1} parent=0
    #allocation2 [shape = 'u8[2048]{0}', space=smem, size = 0x800, scoped, tag = 'input window, operand 1, single buffered']
    #allocation3 [shape = 's32[2]{0}', space=sflag, size = 0x8, scoped, tag = 'scoped memory for se_module_forward.1']
    #allocation4 [shape = 'u8[512]{0}', space=smem, size = 0x200, scoped, tag = 'input window, operand 2, single buffered']
    #allocation5 [shape = 's32[1]{0}', space=sflag, size = 0x4, scoped, tag = 'scoped memory for se_module_forward.1']
    #allocation6 [shape = 'u8[1024]{0}', space=smem, size = 0x400, scoped, tag = 'input window, operand 3, single buffered']
    #allocation7 [shape = 'u8[512]{0}', space=smem, size = 0x200, scoped, tag = 'input window, operand 4, single buffered']
    #allocation8 [shape = 's32[1]{0}', space=sflag, size = 0x4, scoped, tag = 'scoped memory for se_module_forward.1']
    %10 = vsyncpa [#allocation3], 0
    %11 = vsyncpa [#allocation5], 0
    %12 = vsyncpa [#allocation8], 0
    loop: start=0, step=1, limit=4
    $region2: #{se_module_forward.1} parent=1 // loop_pre_header
      _
    $region3: #{se_module_forward.1} parent=1 // loop_header
      %s14 = sphi 0, %s18
      %p15 = scmp.ge.s32.totalorder %s14, 4
      %s21 = sphi 0, %s33
      %s22 = sphi 0, %s29
      %s23 = sphi 0, %s21
      %s24 = sphi 0, %s22
      %s25 = sphi 0, %s23
      %s26 = sphi 0, %s24
      %s38 = sphi 0, %s40
      %s41 = sphi 0, %s38
      %s42 = sphi 0, %s41
      %s58 = sphi 0, %s42
      %s62 = sphi 0, %s62
      %s64 = sphi 0, %s62
      %s65 = sphi 0, %s64
      %s79 = sphi 0, %s65
      %s83 = sphi 0, %s83
      %s85 = sphi 0, %s83
      %s86 = sphi 0, %s85
      %s100 = sphi 0, %s86
      %s104 = sphi 0, %s104
      %s106 = sphi 0, %s104
      %s107 = sphi 0, %s106
      %s121 = sphi 0, %s107
      %s125 = sphi 0, %s125
      %s127 = sphi 0, %s125
      %s128 = sphi 0, %s127
      %s142 = sphi 0, %s128
      %s150 = sphi 0, %s152
      %s153 = sphi 0, %s150
      %s154 = sphi 0, %s153
      %s170 = sphi 0, %s154
    $region4: #{se_module_forward.1} parent=1 // loop_header_branch
      %17 = sbr.rel (%p15) target = $region8
    $region5: #{se_module_forward.1} parent=1 // loop_body
      %s19 = ssub.s32 %s14, 1
      %s20 = ssub.s32 %s14, 2
      %s27 = sadd.s32 1, %s22
      %p28 = scmp.ge.s32.totalorder %s27, 1
      %s29 = scalar_select %p28, 0, %s27
      %s30 = sadd.s32 1, %s21
      %s31 = scalar_select %p28, %s30, %s21
      %p32 = scmp.ge.s32.totalorder %s31, 2
      %s33 = scalar_select %p32, 0, %s31
      %s34 = ssub.s32 %s21, %s33
      %s35 = ssub.s32 %s22, %s29
      %s36 = sor.u32 %s34, %s35
      %p37 = scmp.eq.s32.totalorder %s36, 0
      %s39 = sadd.s32 %s38, 1
      %s40 = scalar_select %p37, %s38, %s39
      %p43 = pneg %p37
      %p44 = scmp.eq.s32.totalorder %s14, 1
      %p45 = por %p43, %p44
      %p46 = scmp.ne.s32.totalorder %s38, %s41
      %p47 = scmp.eq.s32.totalorder %s14, 0
      %p48 = por %p46, %p47
      %p49 = scmp.ne.s32.totalorder %s38, %s41
      %p50 = scmp.eq.s32.totalorder %s19, 1
      %p51 = por %p49, %p50
      %p52 = scmp.ne.s32.totalorder %s41, %s42
      %p53 = scmp.eq.s32.totalorder %s19, 0
      %p54 = por %p52, %p53
      %p55 = scmp.ne.s32.totalorder %s41, %s42
      %p56 = scmp.eq.s32.totalorder %s20, 1
      %p57 = por %p55, %p56
      %p59 = scmp.ne.s32.totalorder %s42, %s58
      %p60 = scmp.eq.s32.totalorder %s20, 0
      %p61 = por %p59, %p60
      %s63 = sadd.s32 %s62, 1
      %p66 = scmp.eq.s32.totalorder %s14, 1
      %p67 = scmp.ne.s32.totalorder %s62, %s64
      %p68 = scmp.eq.s32.totalorder %s14, 0
      %p69 = por %p67, %p68
      %p70 = scmp.ne.s32.totalorder %s62, %s64
      %p71 = scmp.eq.s32.totalorder %s19, 1
      %p72 = por %p70, %p71
      %p73 = scmp.ne.s32.totalorder %s64, %s65
      %p74 = scmp.eq.s32.totalorder %s19, 0
      %p75 = por %p73, %p74
      %p76 = scmp.ne.s32.totalorder %s64, %s65
      %p77 = scmp.eq.s32.totalorder %s20, 1
      %p78 = por %p76, %p77
      %p80 = scmp.ne.s32.totalorder %s65, %s79
      %p81 = scmp.eq.s32.totalorder %s20, 0
      %p82 = por %p80, %p81
      %s84 = sadd.s32 %s83, 1
      %p87 = scmp.eq.s32.totalorder %s14, 1
      %p88 = scmp.ne.s32.totalorder %s83, %s85
      %p89 = scmp.eq.s32.totalorder %s14, 0
      %p90 = por %p88, %p89
      %p91 = scmp.ne.s32.totalorder %s83, %s85
      %p92 = scmp.eq.s32.totalorder %s19, 1
      %p93 = por %p91, %p92
      %p94 = scmp.ne.s32.totalorder %s85, %s86
      %p95 = scmp.eq.s32.totalorder %s19, 0
      %p96 = por %p94, %p95
      %p97 = scmp.ne.s32.totalorder %s85, %s86
      %p98 = scmp.eq.s32.totalorder %s20, 1
      %p99 = por %p97, %p98
      %p101 = scmp.ne.s32.totalorder %s86, %s100
      %p102 = scmp.eq.s32.totalorder %s20, 0
      %p103 = por %p101, %p102
      %s105 = sadd.s32 %s104, 1
      %p108 = scmp.eq.s32.totalorder %s14, 1
      %p109 = scmp.ne.s32.totalorder %s104, %s106
      %p110 = scmp.eq.s32.totalorder %s14, 0
      %p111 = por %p109, %p110
      %p112 = scmp.ne.s32.totalorder %s104, %s106
      %p113 = scmp.eq.s32.totalorder %s19, 1
      %p114 = por %p112, %p113
      %p115 = scmp.ne.s32.totalorder %s106, %s107
      %p116 = scmp.eq.s32.totalorder %s19, 0
      %p117 = por %p115, %p116
      %p118 = scmp.ne.s32.totalorder %s106, %s107
      %p119 = scmp.eq.s32.totalorder %s20, 1
      %p120 = por %p118, %p119
      %p122 = scmp.ne.s32.totalorder %s107, %s121
      %p123 = scmp.eq.s32.totalorder %s20, 0
      %p124 = por %p122, %p123
      %s126 = sadd.s32 %s125, 1
      %p129 = scmp.eq.s32.totalorder %s14, 1
      %p130 = scmp.ne.s32.totalorder %s125, %s127
      %p131 = scmp.eq.s32.totalorder %s14, 0
      %p132 = por %p130, %p131
      %p133 = scmp.ne.s32.totalorder %s125, %s127
      %p134 = scmp.eq.s32.totalorder %s19, 1
      %p135 = por %p133, %p134
      %p136 = scmp.ne.s32.totalorder %s127, %s128
      %p137 = scmp.eq.s32.totalorder %s19, 0
      %p138 = por %p136, %p137
      %p139 = scmp.ne.s32.totalorder %s127, %s128
      %p140 = scmp.eq.s32.totalorder %s20, 1
      %p141 = por %p139, %p140
      %p143 = scmp.ne.s32.totalorder %s128, %s142
      %p144 = scmp.eq.s32.totalorder %s20, 0
      %p145 = por %p143, %p144
      %s146 = ssub.s32 %s21, %s33
      %s147 = ssub.s32 %s22, %s29
      %s148 = sor.u32 %s146, %s147
      %p149 = scmp.eq.s32.totalorder %s148, 0
      %s151 = sadd.s32 %s150, 1
      %s152 = scalar_select %p149, %s150, %s151
      %p155 = pneg %p149
      %p156 = scmp.eq.s32.totalorder %s14, 1
      %p157 = por %p155, %p156
      %p158 = scmp.ne.s32.totalorder %s150, %s153
      %p159 = scmp.eq.s32.totalorder %s14, 0
      %p160 = por %p158, %p159
      %p161 = scmp.ne.s32.totalorder %s150, %s153
      %p162 = scmp.eq.s32.totalorder %s19, 1
      %p163 = por %p161, %p162
      %p164 = scmp.ne.s32.totalorder %s153, %s154
      %p165 = scmp.eq.s32.totalorder %s19, 0
      %p166 = por %p164, %p165
      %p167 = scmp.ne.s32.totalorder %s153, %s154
      %p168 = scmp.eq.s32.totalorder %s20, 1
      %p169 = por %p167, %p168
      %p171 = scmp.ne.s32.totalorder %s154, %s170
      %p172 = scmp.eq.s32.totalorder %s20, 0
      %p173 = por %p171, %p172
      %p174 = scmp.le.s32.totalorder 1, %s14
      %p175 = scmp.lt.s32.totalorder %s14, 3
      %p176 = pnand %p174, %p175
      %p177 = pneg %p176
      // Predicated region
      $region9: #{se_module_forward.1} parent=5 // pred_check
        _
      $region10: #{se_module_forward.1} parent=5 // pred_check_branch
        %179 = sbr.rel (%p176) target = $region12
      $region11: #{se_module_forward.1} parent=5 // pred_region
        %s180 = ssub.s32 %s14, 1
        // Predicated region
        $region13: #{se_module_forward.1} parent=11 // pred_check
          %p181 = pneg %p75
        $region14: #{se_module_forward.1} parent=11 // pred_check_branch
          %183 = sbr.rel (%p181) target = $region16
        $region15: #{se_module_forward.1} parent=11 // pred_region
          %185 = vsyncadd [#allocation3], 0
          %s187 = sshll.u32 %s1, 4
          %s188 = int_to_ptr.vmem [resolvable:$true] %s187
          %190 = dma.vmem_to_smem %s188, 64, [#allocation2], [#allocation3]
        $region16: #{se_module_forward.1} parent=11 // pred_fallthru
          _
        // Predicated region
        $region17: #{se_module_forward.1} parent=11 // pred_check
          %p191 = pneg %p96
        $region18: #{se_module_forward.1} parent=11 // pred_check_branch
          %193 = sbr.rel (%p191) target = $region20
        $region19: #{se_module_forward.1} parent=11 // pred_region
          %195 = vsyncadd [#allocation5], 0
          %s197 = sshll.u32 %s2, 4
          %s198 = int_to_ptr.vmem [resolvable:$true] %s197
          %200 = dma.vmem_to_smem %s198, 16, [#allocation4], [#allocation5]
        $region20: #{se_module_forward.1} parent=11 // pred_fallthru
          _
        // Predicated region
        $region21: #{se_module_forward.1} parent=11 // pred_check
          %p201 = pneg %p117
        $region22: #{se_module_forward.1} parent=11 // pred_check_branch
          %203 = sbr.rel (%p201) target = $region24
        $region23: #{se_module_forward.1} parent=11 // pred_region
          %205 = vsyncadd [#allocation5], 0
          %s207 = sshll.u32 %s3, 4
          %s208 = int_to_ptr.vmem [resolvable:$true] %s207
          %210 = dma.vmem_to_smem %s208, 32, [#allocation6], [#allocation5]
        $region24: #{se_module_forward.1} parent=11 // pred_fallthru
          _
        // Predicated region
        $region25: #{se_module_forward.1} parent=11 // pred_check
          %p211 = pneg %p138
        $region26: #{se_module_forward.1} parent=11 // pred_check_branch
          %213 = sbr.rel (%p211) target = $region28
        $region27: #{se_module_forward.1} parent=11 // pred_region
          %215 = vsyncadd [#allocation8], 0
          %s217 = sshll.u32 %s4, 4
          %s218 = int_to_ptr.vmem [resolvable:$true] %s217
          %220 = dma.vmem_to_smem %s218, 16, [#allocation7], [#allocation8]
        $region28: #{se_module_forward.1} parent=11 // pred_fallthru
          _
      $region12: #{se_module_forward.1} parent=5 // pred_fallthru
        _
      %p221 = scmp.lt.s32.totalorder %s14, 2
      // Predicated region
      $region29: #{se_module_forward.1} parent=5 // pred_check
        %p222 = pneg %p221
      $region30: #{se_module_forward.1} parent=5 // pred_check_branch
        %224 = sbr.rel (%p222) target = $region32
      $region31: #{se_module_forward.1} parent=5 // pred_region
        // Predicated region
        $region33: #{se_module_forward.1} parent=31 // pred_check
          %p225 = pneg %p48
        $region34: #{se_module_forward.1} parent=31 // pred_check_branch
          %227 = sbr.rel (%p225) target = $region36
        $region35: #{se_module_forward.1} parent=31 // pred_region
          %p228 = scmp.lt.s32.totalorder %s21, 1
          %s229 = scalar_select %p228, %s21, 1
          %p230 = scmp.lt.s32.totalorder %s22, 0
          %s231 = scalar_select %p230, %s22, 0
          %s232 = smul.addr %s229, 4
          %s233 = sadd.s32 %s231, %s232
          %s234 = smul.addr %s233, 2
          %s235 = scalar_lea.vmem %s0, %s234
        $region36: #{se_module_forward.1} parent=31 // pred_fallthru
          _
      $region32: #{se_module_forward.1} parent=5 // pred_fallthru
        _
      %p236 = scmp.le.s32.totalorder 1, %s14
      %p237 = scmp.lt.s32.totalorder %s14, 3
      %p238 = pnand %p236, %p237
      %p239 = pneg %p238
      // Predicated region
      $region37: #{se_module_forward.1} parent=5 // pred_check
        _
      $region38: #{se_module_forward.1} parent=5 // pred_check_branch
        %241 = sbr.rel (%p238) target = $region40
      $region39: #{se_module_forward.1} parent=5 // pred_region
        %s242 = ssub.s32 %s14, 1
        // Predicated region
        $region41: #{se_module_forward.1} parent=39 // pred_check
          %p243 = pneg %p75
        $region42: #{se_module_forward.1} parent=39 // pred_check_branch
          %245 = sbr.rel (%p243) target = $region44
        $region43: #{se_module_forward.1} parent=39 // pred_region
          %247 = dma.done [#allocation3], 64
        $region44: #{se_module_forward.1} parent=39 // pred_fallthru
          _
        // Predicated region
        $region45: #{se_module_forward.1} parent=39 // pred_check
          %p248 = pneg %p96
        $region46: #{se_module_forward.1} parent=39 // pred_check_branch
          %250 = sbr.rel (%p248) target = $region48
        $region47: #{se_module_forward.1} parent=39 // pred_region
          %252 = dma.done [#allocation5], 16
        $region48: #{se_module_forward.1} parent=39 // pred_fallthru
          _
        // Predicated region
        $region49: #{se_module_forward.1} parent=39 // pred_check
          %p253 = pneg %p117
        $region50: #{se_module_forward.1} parent=39 // pred_check_branch
          %255 = sbr.rel (%p253) target = $region52
        $region51: #{se_module_forward.1} parent=39 // pred_region
          %257 = dma.done [#allocation5], 32
        $region52: #{se_module_forward.1} parent=39 // pred_fallthru
          _
        // Predicated region
        $region53: #{se_module_forward.1} parent=39 // pred_check
          %p258 = pneg %p138
        $region54: #{se_module_forward.1} parent=39 // pred_check_branch
          %260 = sbr.rel (%p258) target = $region56
        $region55: #{se_module_forward.1} parent=39 // pred_region
          %262 = dma.done [#allocation8], 16
        $region56: #{se_module_forward.1} parent=39 // pred_fallthru
          _
        %263 = sfence
        %p264 = scmp.lt.s32.totalorder %s23, 1
        %s265 = scalar_select %p264, %s23, 1
        %p266 = scmp.lt.s32.totalorder %s24, 0
        %s267 = scalar_select %p266, %s24, 0
        %s268 = smul.addr %s265, 4
        %s269 = sadd.s32 %s267, %s268
        %s270 = smul.addr %s269, 2
        %s271 = scalar_lea.vmem %s0, %s270
        %p272 = pneg %p54
        %p273 = pneg %p51
        %p274 = pneg %p75
        %p275 = pneg %p72
        %p276 = pneg %p96
        %p277 = pneg %p93
        %p278 = pneg %p117
        %p279 = pneg %p114
        %p280 = pneg %p138
        %p281 = pneg %p135
        %p282 = pneg %p166
        %p283 = pneg %p163
        %p284 = scmp.lt.s32.totalorder %s23, 1
        %s285 = scalar_select %p284, %s23, 1
        %p286 = scmp.lt.s32.totalorder %s24, 0
        %s287 = scalar_select %p286, %s24, 0
        %s288 = smul.addr %s285, 4
        %s289 = sadd.s32 %s287, %s288
        %s290 = smul.addr %s289, 2
        %s291 = scalar_lea.vmem %s5, %s290
        %p292 = scmp.lt.s32.totalorder %s23, 1
        %s293 = scalar_select %p292, %s23, 1
        %p294 = scmp.lt.s32.totalorder %s24, 0
        %s295 = scalar_select %p294, %s24, 0
        %s296 = smul.addr %s293, 4
        %s297 = sadd.s32 %s295, %s296
        %s298 = smul.addr %s297, 2
        %s299 = scalar_lea.vmem %s0, %s298
        %p300 = scmp.lt.s32.totalorder %s23, 1
        %s301 = scalar_select %p300, %s23, 1
        %p302 = scmp.lt.s32.totalorder %s24, 0
        %s303 = scalar_select %p302, %s24, 0
        %s304 = smul.addr %s301, 4
        %s305 = sadd.s32 %s303, %s304
        %s306 = smul.addr %s305, 2
        %s307 = scalar_lea.vmem %s5, %s306
        %v308 = vld [vmem:[%s299] sm:$0x3]
        %s309 = sld [smem:[#allocation2]]
        %v310 = vstv %s309
        %v311 = vmul.f32 %v308, %v310
        %s312 = sld [smem:[#allocation4]]
        %v313 = vstv %s312
        %v314 = vadd.f32 %v311, %v313
        %s315 = sld [smem:[#allocation2 + $0x1]]
        %v316 = vstv %s315
        %v317 = vmul.f32 %v308, %v316
        %s318 = sld [smem:[#allocation4 + $0x1]]
        %v319 = vstv %s318
        %v320 = vadd.f32 %v317, %v319
        %s321 = scalar_lea.vmem %s299, 2
        %v322 = vld [vmem:[%s321] sm:$0x3]
        %s323 = sld [smem:[#allocation2 + $0x80]]
        %v324 = vstv %s323
        %v325 = vmul.f32 %v322, %v324
        %v326 = vadd.f32 %v314, %v325
        %s327 = sld [smem:[#allocation2 + $0x81]]
        %v328 = vstv %s327
        %v329 = vmul.f32 %v322, %v328
        %v330 = vadd.f32 %v320, %v329
        %s331 = scalar_lea.vmem %s299, 4
        %v332 = vld [vmem:[%s331] sm:$0x3]
        %s333 = sld [smem:[#allocation2 + $0x100]]
        %v334 = vstv %s333
        %v335 = vmul.f32 %v332, %v334
        %v336 = vadd.f32 %v326, %v335
        %s337 = sld [smem:[#allocation2 + $0x101]]
        %v338 = vstv %s337
        %v339 = vmul.f32 %v332, %v338
        %v340 = vadd.f32 %v330, %v339
        %s341 = scalar_lea.vmem %s299, 6
        %v342 = vld [vmem:[%s341] sm:$0x3]
        %s343 = sld [smem:[#allocation2 + $0x180]]
        %v344 = vstv %s343
        %v345 = vmul.f32 %v342, %v344
        %v346 = vadd.f32 %v336, %v345
        %s347 = sld [smem:[#allocation2 + $0x181]]
        %v348 = vstv %s347
        %v349 = vmul.f32 %v342, %v348
        %v350 = vadd.f32 %v340, %v349
        %v351 = vmax.f32 %v346, 0.0
        %v352 = vmax.f32 %v350, 0.0
        %s353 = sld [smem:[#allocation6]]
        %v354 = vstv %s353
        %v355 = vmul.f32 %v351, %v354
        %s356 = sld [smem:[#allocation7]]
        %v357 = vstv %s356
        %v358 = vadd.f32 %v355, %v357
        %s359 = sld [smem:[#allocation6 + $0x80]]
        %v360 = vstv %s359
        %v361 = vmul.f32 %v352, %v360
        %v362 = vadd.f32 %v358, %v361
        %v363 = vmul.f32 %v362, 0.5
        %v364 = vtanh.pop %v363
        %v365 = vadd.f32 %v364, 1.0
        %v366 = vmul.f32 %v365, 0.5
        %v367 = vmul.f32 %v308, %v366
        %368 = vst [vmem:[%s307] sm:$0x3] %v367
        %s369 = sld [smem:[#allocation6 + $0x1]]
        %v370 = vstv %s369
        %v371 = vmul.f32 %v351, %v370
        %s372 = sld [smem:[#allocation7 + $0x1]]
        %v373 = vstv %s372
        %v374 = vadd.f32 %v371, %v373
        %s375 = sld [smem:[#allocation6 + $0x81]]
        %v376 = vstv %s375
        %v377 = vmul.f32 %v352, %v376
        %v378 = vadd.f32 %v374, %v377
        %v379 = vmul.f32 %v378, 0.5
        %v380 = vtanh.pop %v379
        %v381 = vadd.f32 %v380, 1.0
        %v382 = vmul.f32 %v381, 0.5
        %v383 = vld [vmem:[%s321] sm:$0x3]
        %v384 = vmul.f32 %v383, %v382
        %s385 = scalar_lea.vmem %s307, 2
        %386 = vst [vmem:[%s385] sm:$0x3] %v384
        %s387 = sld [smem:[#allocation6 + $0x2]]
        %v388 = vstv %s387
        %v389 = vmul.f32 %v351, %v388
        %s390 = sld [smem:[#allocation7 + $0x2]]
        %v391 = vstv %s390
        %v392 = vadd.f32 %v389, %v391
        %s393 = sld [smem:[#allocation6 + $0x82]]
        %v394 = vstv %s393
        %v395 = vmul.f32 %v352, %v394
        %v396 = vadd.f32 %v392, %v395
        %v397 = vmul.f32 %v396, 0.5
        %v398 = vtanh.pop %v397
        %v399 = vadd.f32 %v398, 1.0
        %v400 = vmul.f32 %v399, 0.5
        %v401 = vld [vmem:[%s331] sm:$0x3]
        %v402 = vmul.f32 %v401, %v400
        %s403 = scalar_lea.vmem %s307, 4
        %404 = vst [vmem:[%s403] sm:$0x3] %v402
        %s405 = sld [smem:[#allocation6 + $0x3]]
        %v406 = vstv %s405
        %v407 = vmul.f32 %v351, %v406
        %s408 = sld [smem:[#allocation7 + $0x3]]
        %v409 = vstv %s408
        %v410 = vadd.f32 %v407, %v409
        %s411 = sld [smem:[#allocation6 + $0x83]]
        %v412 = vstv %s411
        %v413 = vmul.f32 %v352, %v412
        %v414 = vadd.f32 %v410, %v413
        %v415 = vmul.f32 %v414, 0.5
        %v416 = vtanh.pop %v415
        %v417 = vadd.f32 %v416, 1.0
        %v418 = vmul.f32 %v417, 0.5
        %v419 = vld [vmem:[%s341] sm:$0x3]
        %v420 = vmul.f32 %v419, %v418
        %s421 = scalar_lea.vmem %s307, 6
        %422 = vst [vmem:[%s421] sm:$0x3] %v420
        %p423 = scmp.lt.s32.totalorder %s23, 1
        %s424 = scalar_select %p423, %s23, 1
        %p425 = scmp.lt.s32.totalorder %s24, 0
        %s426 = scalar_select %p425, %s24, 0
        %s427 = smul.addr %s424, 4
        %s428 = sadd.s32 %s426, %s427
        %s429 = smul.addr %s428, 2
        %s430 = scalar_lea.vmem %s5, %s429
        // Predicated region
        $region57: #{se_module_forward.1} parent=39 // pred_check
          %p431 = pneg %p163
        $region58: #{se_module_forward.1} parent=39 // pred_check_branch
          %433 = sbr.rel (%p431) target = $region60
        $region59: #{se_module_forward.1} parent=39 // pred_region
          _
        $region60: #{se_module_forward.1} parent=39 // pred_fallthru
          _
      $region40: #{se_module_forward.1} parent=5 // pred_fallthru
        _
      %p434 = scmp.le.s32.totalorder 2, %s14
      // Predicated region
      $region61: #{se_module_forward.1} parent=5 // pred_check
        %p435 = pneg %p434
      $region62: #{se_module_forward.1} parent=5 // pred_check_branch
        %437 = sbr.rel (%p435) target = $region64
      $region63: #{se_module_forward.1} parent=5 // pred_region
        %s438 = ssub.s32 %s14, 2
        // Predicated region
        $region65: #{se_module_forward.1} parent=63 // pred_check
          %p439 = pneg %p169
        $region66: #{se_module_forward.1} parent=63 // pred_check_branch
          %441 = sbr.rel (%p439) target = $region68
        $region67: #{se_module_forward.1} parent=63 // pred_region
          %p442 = scmp.lt.s32.totalorder %s25, 1
          %s443 = scalar_select %p442, %s25, 1
          %p444 = scmp.lt.s32.totalorder %s26, 0
          %s445 = scalar_select %p444, %s26, 0
          %s446 = smul.addr %s443, 4
          %s447 = sadd.s32 %s445, %s446
          %s448 = smul.addr %s447, 2
          %s449 = scalar_lea.vmem %s5, %s448
        $region68: #{se_module_forward.1} parent=63 // pred_fallthru
          _
      $region64: #{se_module_forward.1} parent=5 // pred_fallthru
        _
    $region6: #{se_module_forward.1} parent=1 // loop_footer
      %s18 = sadd.s32 1, %s14
    $region7: #{se_module_forward.1} parent=1 // loop_footer_branch
      %13 = sbr.rel target = $region3
    $region8: #{se_module_forward.1} parent=1 // loop_exit
      _
    %450 = vsyncpa [#allocation3], 1
    %s451 = scalar_lea.sflag [#allocation3], 1
    %452 = vsyncpa %s451, 1
    %453 = vsyncpa [#allocation5], 1
    %454 = vsyncpa [#allocation8], 1

</llo_original>
